<compile_context>
chip_gen: v7x
topology: tpu7x:2x2x1
jax: 0.10.0
libtpu: 0.0.40
codegen_flags: <defaults>
</compile_context>

<pallas_src>
import functools

import jax
import jax.numpy as jnp
from jax import lax
from jax.experimental import pallas as pl
from jax.experimental.pallas import tpu as pltpu

NEG_SLOPE = 0.2
BN_EPS = 1e-5
KW = 4
PADW = 1
LANE = 128


def _round_up(x, m):
    return (x + m - 1) // m * m


# ----------------------------------------------------------------------------
# Pallas kernels
# ----------------------------------------------------------------------------
def _make_conv_kernel(taps, oh, ow, neg_slope, has_bias, want_stats):
    """Per-batch-element conv kernel (shifted-window accumulation, in-VMEM im2col).

    refs:  x_ref    (1, Hi, Wi, Ce)   bf16
           w_ref    (T,  Ce, Cop)     bf16  (T = taps*taps)
           [b_ref   (1, Cop)          f32]   if has_bias
           o_ref    (1, OH, OW, Cop)
           [stats   (1, 2, Cop)       f32]   if want_stats  (sum, sum of squares)
    """
    T = taps * taps

    def kernel(x_ref, w_ref, *rest):
        idx = 0
        b_ref = None
        if has_bias:
            b_ref = rest[idx]
            idx += 1
        o_ref = rest[idx]
        idx += 1
        stats_ref = rest[idx] if want_stats else None

        cop = o_ref.shape[-1]

        def row_body(r, carry):
            # One output row: M = OW, K = Ce, N = Cop (lane-dense 128-multiple).
            acc = jnp.zeros((ow, cop), jnp.float32)
            for t in range(T):
                dh, dw = t // taps, t % taps
                lhs = x_ref[0, r + dh, dw:dw + ow, :]          # (OW, Ce) bf16
                acc = acc + jnp.dot(lhs, w_ref[t],
                                    preferred_element_type=jnp.float32)
            if has_bias:
                acc = acc + b_ref[...]
            if neg_slope is not None:
                acc = jnp.where(acc >= 0, acc, neg_slope * acc)
            o_ref[0, r] = acc.astype(o_ref.dtype)              # lane-dense store
            if want_stats:
                s, sq = carry
                s = s + jnp.sum(acc, axis=0, keepdims=True)
                sq = sq + jnp.sum(acc * acc, axis=0, keepdims=True)
                return (s, sq)
            return carry

        if want_stats:
            init = (jnp.zeros((1, cop), jnp.float32),
                    jnp.zeros((1, cop), jnp.float32))
            s, sq = lax.fori_loop(0, oh, row_body, init)
            stats_ref[0, 0:1, :] = s
            stats_ref[0, 1:2, :] = sq
        else:
            lax.fori_loop(0, oh, row_body, 0)

    return kernel


def _bn_apply_kernel(y_ref, scale_ref, shift_ref, o_ref, *, neg_slope):
    """Apply precomputed batch-norm scale/shift + LeakyReLU on an (tm, Cop) tile."""
    y = y_ref[...].astype(jnp.float32)
    out = y * scale_ref[...] + shift_ref[...]
    out = jnp.where(out >= 0, out, neg_slope * out)
    o_ref[...] = out.astype(o_ref.dtype)


# ----------------------------------------------------------------------------
# Wrappers
# ----------------------------------------------------------------------------
def _conv_layer(x_nhwc, layer):
    """x_nhwc: (N, H, W, Ce_in) bf16 activations (channel-padded after layer 0)."""
    stride = layer["stride"]
    w2 = layer["w2"]                       # (T, Ce, Cop) bf16
    T, ce, cop = w2.shape
    taps = 2 if stride == 2 else 4
    assert T == taps * taps

    # spatial zero padding (padw=1); 1x copy, no im2col inflation
    xp = jnp.pad(x_nhwc, ((0, 0), (PADW, PADW), (PADW, PADW), (0, 0)))
    n, hp, wp, c = xp.shape
    if stride == 2:
        # space-to-depth: stride-2 4x4 conv == stride-1 2x2-tap conv on (Hp/2, Wp/2, 4C)
        xs = xp.reshape(n, hp // 2, 2, wp // 2, 2, c)
        xs = jnp.transpose(xs, (0, 1, 3, 2, 4, 5)).reshape(n, hp // 2, wp // 2, 4 * c)
    else:
        xs = xp
    xs = xs.astype(jnp.bfloat16)
    _, hi, wi, ce_x = xs.shape
    assert ce_x == ce, (ce_x, ce)
    oh = hi - taps + 1
    ow = wi - taps + 1

    has_bias = layer["b2"] is not None
    want_stats = layer["use_bn"]
    kernel = _make_conv_kernel(taps, oh, ow, layer["neg_slope"], has_bias, want_stats)

    in_specs = [
        pl.BlockSpec((1, hi, wi, ce), lambda b: (b, 0, 0, 0)),
        pl.BlockSpec((T, ce, cop), lambda b: (0, 0, 0)),
    ]
    inputs = [xs, w2]
    if has_bias:
        in_specs.append(pl.BlockSpec((1, cop), lambda b: (0, 0)))
        inputs.append(layer["b2"])

    cparams = pltpu.CompilerParams(dimension_semantics=("parallel",))

    if want_stats:
        out_shape = (jax.ShapeDtypeStruct((n, oh, ow, cop), layer["out_dtype"]),
                     jax.ShapeDtypeStruct((n, 2, cop), jnp.float32))
        out_specs = (pl.BlockSpec((1, oh, ow, cop), lambda b: (b, 0, 0, 0)),
                     pl.BlockSpec((1, 2, cop), lambda b: (b, 0, 0)))
        y, stats = pl.pallas_call(
            kernel, grid=(n,), in_specs=in_specs, out_specs=out_specs,
            out_shape=out_shape, compiler_params=cparams)(*inputs)
        return y, stats

    out_shape = jax.ShapeDtypeStruct((n, oh, ow, cop), layer["out_dtype"])
    out_specs = pl.BlockSpec((1, oh, ow, cop), lambda b: (b, 0, 0, 0))
    y = pl.pallas_call(
        kernel, grid=(n,), in_specs=in_specs, out_specs=out_specs,
        out_shape=out_shape, compiler_params=cparams)(*inputs)
    return y, None


def _bn_lrelu(y, stats, gamma_p, beta_p):
    """Training-mode BatchNorm (batch stats from the conv kernel) + LeakyReLU."""
    n, oh, ow, cop = y.shape
    m = n * oh * ow
    # Tiny O(C) reduction of the per-image partial sums (negligible XLA work).
    s = jnp.sum(stats, axis=0)                         # (2, Cop) f32
    mean = s[0] / m
    var = jnp.maximum(s[1] / m - mean * mean, 0.0)     # biased var (torch training fwd)
    scale = gamma_p * lax.rsqrt(var + BN_EPS)
    shift = beta_p - mean * scale

    y2 = y.reshape(m, cop)
    tm = min(512, m)
    out = pl.pallas_call(
        functools.partial(_bn_apply_kernel, neg_slope=NEG_SLOPE),
        grid=(pl.cdiv(m, tm),),
        in_specs=[pl.BlockSpec((tm, cop), lambda i: (i, 0)),
                  pl.BlockSpec((1, cop), lambda i: (0, 0)),
                  pl.BlockSpec((1, cop), lambda i: (0, 0))],
        out_specs=pl.BlockSpec((tm, cop), lambda i: (i, 0)),
        out_shape=jax.ShapeDtypeStruct((m, cop), jnp.bfloat16),
        compiler_params=pltpu.CompilerParams(dimension_semantics=("parallel",)),
    )(y2, scale.reshape(1, cop).astype(jnp.float32),
      shift.reshape(1, cop).astype(jnp.float32))
    return out.reshape(n, oh, ow, cop)


# ----------------------------------------------------------------------------
# Parameters (deterministic synthetic init, shapes from NLayerDiscriminator.__init__)
# ----------------------------------------------------------------------------
def init_params(key, input_nc=3, ndf=8, n_layers=3):
    # (cin, cout, stride, has_bias, has_bn) for each conv of the Sequential.
    specs = [(input_nc, ndf, 2, True, False)]
    nf_mult = 1
    for n_ in range(1, n_layers):
        nf_prev, nf_mult = nf_mult, min(2 ** n_, 8)
        specs.append((ndf * nf_prev, ndf * nf_mult, 2, False, True))
    nf_prev, nf_mult = nf_mult, min(2 ** n_layers, 8)
    specs.append((ndf * nf_prev, ndf * nf_mult, 1, False, True))
    specs.append((ndf * nf_mult, 1, 1, True, False))

    params = []
    for (cin, cout, stride, has_bias, has_bn) in specs:
        key, wk, bk = jax.random.split(key, 3)
        params.append(dict(
            w=0.02 * jax.random.normal(wk, (cout, cin, KW, KW), jnp.float32),
            b=(0.01 * jax.random.normal(bk, (cout,), jnp.float32)) if has_bias else None,
            gamma=jnp.ones((cout,), jnp.float32) if has_bn else None,
            beta=jnp.zeros((cout,), jnp.float32) if has_bn else None,
            stride=stride,
            use_bn=has_bn,
        ))
    return params


def _prepare_layers(params, input_nc):
    """Rearrange torch-layout weights into kernel-ready (T, Ce, Cop) bf16 stacks."""
    layers = []
    cin_eff = input_nc                       # channels carried by the activations
    last = len(params) - 1
    for i, p in enumerate(params):
        w = p["w"]                           # (cout, cin, 4, 4)
        cout, cin = w.shape[0], w.shape[1]
        stride = p["stride"]
        cop = _round_up(cout, LANE)
        if cin_eff > cin:                    # zero-pad cin up to the padded activation width
            w = jnp.pad(w, ((0, 0), (0, cin_eff - cin), (0, 0), (0, 0)))
        w_khwc = jnp.transpose(w, (2, 3, 1, 0))          # (kh, kw, cin_eff, cout)
        if stride == 2:
            # kh=2dh+a, kw=2dw+b  ->  tap (dh,dw), channel (a,b,c)  (matches s2d layout)
            w_t = w_khwc.reshape(2, 2, 2, 2, cin_eff, cout)
            w_t = jnp.transpose(w_t, (0, 2, 1, 3, 4, 5)).reshape(4, 4 * cin_eff, cout)
        else:
            w_t = w_khwc.reshape(16, cin_eff, cout)
        w_t = jnp.pad(w_t, ((0, 0), (0, 0), (0, cop - cout)))   # lane-pad Cout

        layer = dict(
            stride=stride,
            use_bn=p["use_bn"],
            w2=w_t.astype(jnp.bfloat16),
            b2=None, gamma=None, beta=None,
            neg_slope=None if (i == last or p["use_bn"]) else NEG_SLOPE,
            out_dtype=jnp.float32 if i == last else jnp.bfloat16,
            cout=cout,
        )
        if p["b"] is not None:
            layer["b2"] = jnp.pad(p["b"], (0, cop - cout)).reshape(1, cop).astype(jnp.float32)
        if p["use_bn"]:
            layer["gamma"] = jnp.pad(p["gamma"], (0, cop - cout)).astype(jnp.float32)
            layer["beta"] = jnp.pad(p["beta"], (0, cop - cout)).astype(jnp.float32)
        layers.append(layer)
        cin_eff = cop                        # next layer sees lane-padded activations
    return layers


# ----------------------------------------------------------------------------
# Forward pass (Pallas) and pure-JAX reference
# ----------------------------------------------------------------------------
def nlayer_discriminator(x_nchw, params):
    input_nc = x_nchw.shape[1]
    layers = _prepare_layers(params, input_nc)
    x = jnp.transpose(x_nchw, (0, 2, 3, 1)).astype(jnp.bfloat16)   # NCHW -> NHWC
    for layer in layers:
        y, stats = _conv_layer(x, layer)
        if layer["use_bn"]:
            x = _bn_lrelu(y, stats, layer["gamma"], layer["beta"])
        else:
            x = y
    out = x[..., :params[-1]["w"].shape[0]]          # drop lane padding (Cout=1)
    return jnp.transpose(out, (0, 3, 1, 2)).astype(jnp.float32)    # NHWC -> NCHW


def _ref_forward(x_nchw, params):
    def conv(x, w, b, stride):
        y = lax.conv_general_dilated(
            x, w, (stride, stride), [(PADW, PADW), (PADW, PADW)],
            dimension_numbers=("NCHW", "OIHW", "NCHW"))
        if b is not None:
            y = y + b.reshape(1, -1, 1, 1)
        return y

    def bn(x, gamma, beta):
        mean = jnp.mean(x, axis=(0, 2, 3), keepdims=True)
        var = jnp.mean((x - mean) ** 2, axis=(0, 2, 3), keepdims=True)
        xhat = (x - mean) * lax.rsqrt(var + BN_EPS)
        return xhat * gamma.reshape(1, -1, 1, 1) + beta.reshape(1, -1, 1, 1)

    def lrelu(x):
        return jnp.where(x >= 0, x, NEG_SLOPE * x)

    x = x_nchw
    last = len(params) - 1
    for i, p in enumerate(params):
        x = conv(x, p["w"], p["b"], p["stride"])
        if p["use_bn"]:
            x = bn(x, p["gamma"], p["beta"])
        if i != last:
            x = lrelu(x)
    return x


# ----------------------------------------------------------------------------
if __name__ == "__main__":
    key = jax.random.PRNGKey(0)
    x = jax.random.normal(key, (2, 3, 32, 32), jnp.float32)  # NCHW, like PyTorch
    params = init_params(jax.random.PRNGKey(1), input_nc=3, ndf=8, n_layers=3)

    out = jax.block_until_ready(nlayer_discriminator(x, params))
    assert out.shape == (2, 1, 2, 2), out.shape

    ref = jax.block_until_ready(_ref_forward(x, params))
    # bf16 operands on the MXU vs f32 XLA reference -> allow a few percent.
    assert jnp.allclose(out, ref, atol=4e-2, rtol=4e-2), float(jnp.max(jnp.abs(out - ref)))

    print("KERNEL_OK")
</pallas_src>

<mosaic_0001>
module attributes {stable_mosaic.version = 11 : i64} {
  func.func @kernel(%arg0: i32, %arg1: memref<1x17x17x12xbf16, #tpu.memory_space<vmem>>, %arg2: memref<4x12x128xbf16, #tpu.memory_space<vmem>>, %arg3: memref<1x128xf32, #tpu.memory_space<vmem>>, %arg4: memref<1x16x16x128xbf16, #tpu.memory_space<vmem>>) attributes {dimension_semantics = [#tpu.dimension_semantics<parallel>], iteration_bounds = array<i64: 2>, scalar_prefetch = 0 : i64, scratch_operands = 0 : i64, tpu.core_type = #tpu.core_type<tc>, window_params = [{transform_indices = @transform_0, window_bounds = array<i64: 1, 17, 17, 12>}, {pipeline_mode = #tpu.pipeline_mode<synchronous>, transform_indices = @transform_1, window_bounds = array<i64: 4, 12, 128>}, {pipeline_mode = #tpu.pipeline_mode<synchronous>, transform_indices = @transform_2, window_bounds = array<i64: 1, 128>}, {transform_indices = @transform_3, window_bounds = array<i64: 1, 16, 16, 128>}]} {
    %c0_i32 = arith.constant 0 : i32
    %c16_i32 = arith.constant 16 : i32
    %0 = arith.addi %c0_i32, %c16_i32 : i32
    %c1_i32 = arith.constant 1 : i32
    scf.for %arg5 = %c0_i32 to %0 step %c1_i32  : i32 {
      %cst = arith.constant 0.000000e+00 : f32
      %1 = vector.broadcast %cst : f32 to vector<16x128xf32>
      %c0_i32_1 = arith.constant 0 : i32
      %2 = arith.addi %arg5, %c0_i32_1 : i32
      %c0 = arith.constant 0 : index
      %3 = arith.index_cast %2 : i32 to index
      %c0_2 = arith.constant 0 : index
      %c0_3 = arith.constant 0 : index
      %4 = vector.load %arg1[%c0, %3, %c0_2, %c0_3] : memref<1x17x17x12xbf16, #tpu.memory_space<vmem>>, vector<1x1x16x12xbf16>
      %5 = vector.shape_cast %4 : vector<1x1x16x12xbf16> to vector<16x12xbf16>
      %c0_4 = arith.constant 0 : index
      %c0_5 = arith.constant 0 : index
      %c0_6 = arith.constant 0 : index
      %6 = vector.load %arg2[%c0_4, %c0_5, %c0_6] : memref<4x12x128xbf16, #tpu.memory_space<vmem>>, vector<1x12x128xbf16>
      %7 = vector.shape_cast %6 : vector<1x12x128xbf16> to vector<12x128xbf16>
      %cst_7 = arith.constant dense<0.000000e+00> : vector<16x128xf32>
      %8 = tpu.matmul %5, %7, %cst_7 {dimension_numbers = #tpu.dot_dimension_numbers<[1], [0], [0], [1], [0, 0, 1, 1], [], []>} : vector<16x12xbf16>, vector<12x128xbf16>, vector<16x128xf32> -> vector<16x128xf32>
      %9 = arith.addf %1, %8 : vector<16x128xf32>
      %c0_i32_8 = arith.constant 0 : i32
      %10 = arith.addi %arg5, %c0_i32_8 : i32
      %c0_9 = arith.constant 0 : index
      %11 = arith.index_cast %10 : i32 to index
      %c1 = arith.constant 1 : index
      %c0_10 = arith.constant 0 : index
      %12 = vector.load %arg1[%c0_9, %11, %c1, %c0_10] : memref<1x17x17x12xbf16, #tpu.memory_space<vmem>>, vector<1x1x16x12xbf16>
      %13 = vector.shape_cast %12 : vector<1x1x16x12xbf16> to vector<16x12xbf16>
      %c1_11 = arith.constant 1 : index
      %c0_12 = arith.constant 0 : index
      %c0_13 = arith.constant 0 : index
      %14 = vector.load %arg2[%c1_11, %c0_12, %c0_13] : memref<4x12x128xbf16, #tpu.memory_space<vmem>>, vector<1x12x128xbf16>
      %15 = vector.shape_cast %14 : vector<1x12x128xbf16> to vector<12x128xbf16>
      %cst_14 = arith.constant dense<0.000000e+00> : vector<16x128xf32>
      %16 = tpu.matmul %13, %15, %cst_14 {dimension_numbers = #tpu.dot_dimension_numbers<[1], [0], [0], [1], [0, 0, 1, 1], [], []>} : vector<16x12xbf16>, vector<12x128xbf16>, vector<16x128xf32> -> vector<16x128xf32>
      %17 = arith.addf %9, %16 : vector<16x128xf32>
      %c1_i32_15 = arith.constant 1 : i32
      %18 = arith.addi %arg5, %c1_i32_15 : i32
      %c0_16 = arith.constant 0 : index
      %19 = arith.index_cast %18 : i32 to index
      %c0_17 = arith.constant 0 : index
      %c0_18 = arith.constant 0 : index
      %20 = vector.load %arg1[%c0_16, %19, %c0_17, %c0_18] : memref<1x17x17x12xbf16, #tpu.memory_space<vmem>>, vector<1x1x16x12xbf16>
      %21 = vector.shape_cast %20 : vector<1x1x16x12xbf16> to vector<16x12xbf16>
      %c2 = arith.constant 2 : index
      %c0_19 = arith.constant 0 : index
      %c0_20 = arith.constant 0 : index
      %22 = vector.load %arg2[%c2, %c0_19, %c0_20] : memref<4x12x128xbf16, #tpu.memory_space<vmem>>, vector<1x12x128xbf16>
      %23 = vector.shape_cast %22 : vector<1x12x128xbf16> to vector<12x128xbf16>
      %cst_21 = arith.constant dense<0.000000e+00> : vector<16x128xf32>
      %24 = tpu.matmul %21, %23, %cst_21 {dimension_numbers = #tpu.dot_dimension_numbers<[1], [0], [0], [1], [0, 0, 1, 1], [], []>} : vector<16x12xbf16>, vector<12x128xbf16>, vector<16x128xf32> -> vector<16x128xf32>
      %25 = arith.addf %17, %24 : vector<16x128xf32>
      %c1_i32_22 = arith.constant 1 : i32
      %26 = arith.addi %arg5, %c1_i32_22 : i32
      %c0_23 = arith.constant 0 : index
      %27 = arith.index_cast %26 : i32 to index
      %c1_24 = arith.constant 1 : index
      %c0_25 = arith.constant 0 : index
      %28 = vector.load %arg1[%c0_23, %27, %c1_24, %c0_25] : memref<1x17x17x12xbf16, #tpu.memory_space<vmem>>, vector<1x1x16x12xbf16>
      %29 = vector.shape_cast %28 : vector<1x1x16x12xbf16> to vector<16x12xbf16>
      %c3 = arith.constant 3 : index
      %c0_26 = arith.constant 0 : index
      %c0_27 = arith.constant 0 : index
      %30 = vector.load %arg2[%c3, %c0_26, %c0_27] : memref<4x12x128xbf16, #tpu.memory_space<vmem>>, vector<1x12x128xbf16>
      %31 = vector.shape_cast %30 : vector<1x12x128xbf16> to vector<12x128xbf16>
      %cst_28 = arith.constant dense<0.000000e+00> : vector<16x128xf32>
      %32 = tpu.matmul %29, %31, %cst_28 {dimension_numbers = #tpu.dot_dimension_numbers<[1], [0], [0], [1], [0, 0, 1, 1], [], []>} : vector<16x12xbf16>, vector<12x128xbf16>, vector<16x128xf32> -> vector<16x128xf32>
      %33 = arith.addf %25, %32 : vector<16x128xf32>
      %c0_29 = arith.constant 0 : index
      %c0_30 = arith.constant 0 : index
      %34 = vector.load %arg3[%c0_29, %c0_30] : memref<1x128xf32, #tpu.memory_space<vmem>>, vector<1x128xf32>
      %35 = vector.broadcast %34 : vector<1x128xf32> to vector<16x128xf32>
      %36 = arith.addf %33, %35 : vector<16x128xf32>
      %cst_31 = arith.constant 0.000000e+00 : f32
      %37 = vector.broadcast %cst_31 : f32 to vector<16x128xf32>
      %38 = arith.cmpf oge, %36, %37 : vector<16x128xf32>
      %cst_32 = arith.constant 2.000000e-01 : f32
      %39 = vector.broadcast %cst_32 : f32 to vector<16x128xf32>
      %40 = arith.mulf %39, %36 : vector<16x128xf32>
      %41 = arith.select %38, %36, %40 : vector<16x128xi1>, vector<16x128xf32>
      %42 = arith.truncf %41 : vector<16x128xf32> to vector<16x128xbf16>
      %c0_33 = arith.constant 0 : index
      %43 = arith.index_cast %arg5 : i32 to index
      %c0_34 = arith.constant 0 : index
      %c0_35 = arith.constant 0 : index
      %44 = vector.load %arg4[%c0_33, %43, %c0_34, %c0_35] : memref<1x16x16x128xbf16, #tpu.memory_space<vmem>>, vector<1x1x16x128xbf16>
      %45 = vector.shape_cast %44 : vector<1x1x16x128xbf16> to vector<16x128xbf16>
      %46 = vector.shape_cast %42 : vector<16x128xbf16> to vector<1x1x16x128xbf16>
      tpu.vector_store %arg4[%c0_33, %43, %c0_34, %c0_35], %46 {strides = array<i32>} : memref<1x16x16x128xbf16, #tpu.memory_space<vmem>>, vector<1x1x16x128xbf16>,
    }
    %c16_i32_0 = arith.constant 16 : i32
    return
  }
  func.func @transform_0(%arg0: i32) -> (i32, i32, i32, i32) {
    %c0_i32 = arith.constant 0 : i32
    %c0_i32_0 = arith.constant 0 : i32
    %c0_i32_1 = arith.constant 0 : i32
    %c0_i32_2 = arith.constant 0 : i32
    return %arg0, %c0_i32, %c0_i32_0, %c0_i32_1 : i32, i32, i32, i32
  }
  func.func @transform_1(%arg0: i32) -> (i32, i32, i32) {
    %c0_i32 = arith.constant 0 : i32
    %c0_i32_0 = arith.constant 0 : i32
    %c0_i32_1 = arith.constant 0 : i32
    %c0_i32_2 = arith.constant 0 : i32
    return %c0_i32, %c0_i32_0, %c0_i32_1 : i32, i32, i32
  }
  func.func @transform_2(%arg0: i32) -> (i32, i32) {
    %c0_i32 = arith.constant 0 : i32
    %c0_i32_0 = arith.constant 0 : i32
    %c0_i32_1 = arith.constant 0 : i32
    return %c0_i32, %c0_i32_0 : i32, i32
  }
  func.func @transform_3(%arg0: i32) -> (i32, i32, i32, i32) {
    %c0_i32 = arith.constant 0 : i32
    %c0_i32_0 = arith.constant 0 : i32
    %c0_i32_1 = arith.constant 0 : i32
    %c0_i32_2 = arith.constant 0 : i32
    return %arg0, %c0_i32, %c0_i32_0, %c0_i32_1 : i32, i32, i32, i32
  }
}

</mosaic_0001>

<llo_original>
// kernel: tpu_custom_call.1
$region0: #{tpu_custom_call.1}
  #allocation0 [shape = 'u32[]', space=smem, size = 0x4, offset = 0x4, fixed_abs, tag = 'smem constant byte address 0x4 - core index']
  #allocation1 [shape = 'u32[144,128]{1,0:T(1,128)}', space=vmem, size = 0x12000, scoped, tag = 'internal scratch']
  %s0 = inlined_call_operand.vmem [shape: bf16[2,17,17,12], index: 0, kind: input, shape index: {}]
  %s1 = inlined_call_operand.vmem [shape: bf16[4,12,128], index: 1, kind: input, shape index: {}]
  %s2 = inlined_call_operand.vmem [shape: f32[1,128], index: 2, kind: input, shape index: {}]
  %s3 = inlined_call_operand.hbm [shape: bf16[2,16,16,128], index: 3, kind: output, shape index: {}]
  %s4 = sld [smem:[#allocation0]]
  $region52: #{tpu_custom_call.1} parent=0
    _
  %s6 = ssub.s32 1, %s4
  %s7 = scalar_select 0, %s6, %s4
  $region1: #{tpu_custom_call.1} parent=0
    #allocation2 [shape = 'u8[131072]{0}', space=vmem, size = 0x20000, scoped, tag = 'output window, operand 0']
    #allocation3 [shape = 's32[2]{0}', space=sflag, size = 0x8, scoped, tag = 'scoped memory for tpu_custom_call.1']
    %8 = vsyncpa [#allocation3], 0
    %s9 = scalar_lea.sflag [#allocation3], 1
    %10 = vsyncpa %s9, 0
    loop: start=0, step=1, limit=4
    $region2: #{tpu_custom_call.1} parent=1 // loop_pre_header
      _
    $region3: #{tpu_custom_call.1} parent=1 // loop_header
      %s12 = sphi 0, %s16
      %p13 = scmp.ge.s32.totalorder %s12, 4
      %s22 = sphi 0, %s24
      %s25 = sphi 0, %s22
      %s26 = sphi 0, %s25
      %s42 = sphi 0, %s26
      %s46 = sphi 0, %s46
      %s48 = sphi 0, %s46
      %s49 = sphi 0, %s48
      %s63 = sphi 0, %s49
      %s67 = sphi 0, %s67
      %s69 = sphi 0, %s67
      %s70 = sphi 0, %s69
      %s84 = sphi 0, %s70
      %s90 = sphi 0, %s92
      %s93 = sphi 0, %s90
      %s94 = sphi 0, %s93
      %s110 = sphi 0, %s94
    $region4: #{tpu_custom_call.1} parent=1 // loop_header_branch
      %15 = sbr.rel (%p13) target = $region8
    $region5: #{tpu_custom_call.1} parent=1 // loop_body
      %s17 = ssub.s32 %s12, 1
      %s18 = ssub.s32 %s12, 2
      %s19 = sadd.s32 %s12, 1
      %s20 = ssub.s32 %s12, %s19
      %p21 = scmp.eq.s32.totalorder %s20, 0
      %s23 = sadd.s32 %s22, 1
      %s24 = scalar_select %p21, %s22, %s23
      %p27 = pneg %p21
      %p28 = scmp.eq.s32.totalorder %s12, 1
      %p29 = por %p27, %p28
      %p30 = scmp.ne.s32.totalorder %s22, %s25
      %p31 = scmp.eq.s32.totalorder %s12, 0
      %p32 = por %p30, %p31
      %p33 = scmp.ne.s32.totalorder %s22, %s25
      %p34 = scmp.eq.s32.totalorder %s17, 1
      %p35 = por %p33, %p34
      %p36 = scmp.ne.s32.totalorder %s25, %s26
      %p37 = scmp.eq.s32.totalorder %s17, 0
      %p38 = por %p36, %p37
      %p39 = scmp.ne.s32.totalorder %s25, %s26
      %p40 = scmp.eq.s32.totalorder %s18, 1
      %p41 = por %p39, %p40
      %p43 = scmp.ne.s32.totalorder %s26, %s42
      %p44 = scmp.eq.s32.totalorder %s18, 0
      %p45 = por %p43, %p44
      %s47 = sadd.s32 %s46, 1
      %p50 = scmp.eq.s32.totalorder %s12, 1
      %p51 = scmp.ne.s32.totalorder %s46, %s48
      %p52 = scmp.eq.s32.totalorder %s12, 0
      %p53 = por %p51, %p52
      %p54 = scmp.ne.s32.totalorder %s46, %s48
      %p55 = scmp.eq.s32.totalorder %s17, 1
      %p56 = por %p54, %p55
      %p57 = scmp.ne.s32.totalorder %s48, %s49
      %p58 = scmp.eq.s32.totalorder %s17, 0
      %p59 = por %p57, %p58
      %p60 = scmp.ne.s32.totalorder %s48, %s49
      %p61 = scmp.eq.s32.totalorder %s18, 1
      %p62 = por %p60, %p61
      %p64 = scmp.ne.s32.totalorder %s49, %s63
      %p65 = scmp.eq.s32.totalorder %s18, 0
      %p66 = por %p64, %p65
      %s68 = sadd.s32 %s67, 1
      %p71 = scmp.eq.s32.totalorder %s12, 1
      %p72 = scmp.ne.s32.totalorder %s67, %s69
      %p73 = scmp.eq.s32.totalorder %s12, 0
      %p74 = por %p72, %p73
      %p75 = scmp.ne.s32.totalorder %s67, %s69
      %p76 = scmp.eq.s32.totalorder %s17, 1
      %p77 = por %p75, %p76
      %p78 = scmp.ne.s32.totalorder %s69, %s70
      %p79 = scmp.eq.s32.totalorder %s17, 0
      %p80 = por %p78, %p79
      %p81 = scmp.ne.s32.totalorder %s69, %s70
      %p82 = scmp.eq.s32.totalorder %s18, 1
      %p83 = por %p81, %p82
      %p85 = scmp.ne.s32.totalorder %s70, %s84
      %p86 = scmp.eq.s32.totalorder %s18, 0
      %p87 = por %p85, %p86
      %s88 = ssub.s32 %s12, %s19
      %p89 = scmp.eq.s32.totalorder %s88, 0
      %s91 = sadd.s32 %s90, 1
      %s92 = scalar_select %p89, %s90, %s91
      %p95 = pneg %p89
      %p96 = scmp.eq.s32.totalorder %s12, 1
      %p97 = por %p95, %p96
      %p98 = scmp.ne.s32.totalorder %s90, %s93
      %p99 = scmp.eq.s32.totalorder %s12, 0
      %p100 = por %p98, %p99
      %p101 = scmp.ne.s32.totalorder %s90, %s93
      %p102 = scmp.eq.s32.totalorder %s17, 1
      %p103 = por %p101, %p102
      %p104 = scmp.ne.s32.totalorder %s93, %s94
      %p105 = scmp.eq.s32.totalorder %s17, 0
      %p106 = por %p104, %p105
      %p107 = scmp.ne.s32.totalorder %s93, %s94
      %p108 = scmp.eq.s32.totalorder %s18, 1
      %p109 = por %p107, %p108
      %p111 = scmp.ne.s32.totalorder %s94, %s110
      %p112 = scmp.eq.s32.totalorder %s18, 0
      %p113 = por %p111, %p112
      %p114 = scmp.le.s32.totalorder 1, %s12
      %p115 = scmp.lt.s32.totalorder %s12, 3
      %p116 = pnand %p114, %p115
      %p117 = pneg %p116
      // Predicated region
      $region9: #{tpu_custom_call.1} parent=5 // pred_check
        _
      $region10: #{tpu_custom_call.1} parent=5 // pred_check_branch
        %119 = sbr.rel (%p116) target = $region12
      $region11: #{tpu_custom_call.1} parent=5 // pred_region
        %s120 = ssub.s32 %s12, 1
        // Predicated region
        $region13: #{tpu_custom_call.1} parent=11 // pred_check
          %p121 = pneg %p59
        $region14: #{tpu_custom_call.1} parent=11 // pred_check_branch
          %123 = sbr.rel (%p121) target = $region16
        $region15: #{tpu_custom_call.1} parent=11 // pred_region
          _
        $region16: #{tpu_custom_call.1} parent=11 // pred_fallthru
          _
        // Predicated region
        $region17: #{tpu_custom_call.1} parent=11 // pred_check
          %p124 = pneg %p80
        $region18: #{tpu_custom_call.1} parent=11 // pred_check_branch
          %126 = sbr.rel (%p124) target = $region20
        $region19: #{tpu_custom_call.1} parent=11 // pred_region
          _
        $region20: #{tpu_custom_call.1} parent=11 // pred_fallthru
          _
      $region12: #{tpu_custom_call.1} parent=5 // pred_fallthru
        _
      %p127 = scmp.lt.s32.totalorder %s12, 2
      // Predicated region
      $region21: #{tpu_custom_call.1} parent=5 // pred_check
        %p128 = pneg %p127
      $region22: #{tpu_custom_call.1} parent=5 // pred_check_branch
        %130 = sbr.rel (%p128) target = $region24
      $region23: #{tpu_custom_call.1} parent=5 // pred_region
        // Predicated region
        $region25: #{tpu_custom_call.1} parent=23 // pred_check
          %p131 = pneg %p32
        $region26: #{tpu_custom_call.1} parent=23 // pred_check_branch
          %133 = sbr.rel (%p131) target = $region28
        $region27: #{tpu_custom_call.1} parent=23 // pred_region
          %p134 = scmp.lt.s32.totalorder %s12, 1
          %s135 = scalar_select %p134, %s12, 1
          %s136 = smul.addr %s135, 51
          %s137 = smul.addr %s136, 4
          %s138 = scalar_lea.vmem %s0, %s137
        $region28: #{tpu_custom_call.1} parent=23 // pred_fallthru
          _
      $region24: #{tpu_custom_call.1} parent=5 // pred_fallthru
        _
      %p139 = scmp.le.s32.totalorder 1, %s12
      %p140 = scmp.lt.s32.totalorder %s12, 3
      %p141 = pnand %p139, %p140
      %p142 = pneg %p141
      // Predicated region
      $region29: #{tpu_custom_call.1} parent=5 // pred_check
        _
      $region30: #{tpu_custom_call.1} parent=5 // pred_check_branch
        %144 = sbr.rel (%p141) target = $region32
      $region31: #{tpu_custom_call.1} parent=5 // pred_region
        %s145 = ssub.s32 %s12, 1
        %p146 = scmp.lt.s32.totalorder %s17, 1
        %s147 = scalar_select %p146, %s17, 1
        %s148 = smul.addr %s147, 51
        %s149 = smul.addr %s148, 4
        %s150 = scalar_lea.vmem %s0, %s149
        %p151 = pneg %p38
        %p152 = pneg %p35
        %p153 = pneg %p59
        %p154 = pneg %p56
        %p155 = pneg %p80
        %p156 = pneg %p77
        %p157 = pneg %p106
        %p158 = pneg %p103
        %s159 = sand.u32 %s93, 1
        %s160 = scalar_lea.sflag [#allocation3], %s159
        %s161 = sand.u32 %s93, 1
        %s162 = smul.addr %s161, 128
        %s163 = scalar_lea.vmem [#allocation2], %s162
        %p164 = scmp.lt.s32.totalorder %s17, 1
        %s165 = scalar_select %p164, %s17, 1
        %s166 = smul.addr %s165, 51
        %s167 = smul.addr %s166, 4
        %s168 = scalar_lea.vmem %s0, %s167
        loop: start=0, step=1, limit=16
        $region33: #{tpu_custom_call.1} parent=31 // loop_pre_header
          _
        $region34: #{tpu_custom_call.1} parent=31 // loop_header
          %s171 = sphi 0, %s175
          %p172 = scmp.ge.s32.totalorder %s171, 16
        $region35: #{tpu_custom_call.1} parent=31 // loop_header_branch
          %174 = sbr.rel (%p172) target = $region39
        $region36: #{tpu_custom_call.1} parent=31 // loop_body
          %s176 = smul.u32 %s171, 3
          %s177 = smul.addr %s176, 4
          %s178 = scalar_lea.vmem %s168, %s177
          %v179 = vld [vmem:[%s178] sm:$0xf]
          %v180 = vld [vmem:[%s178 + $0x4] sm:$0xf]
          %v181 = vld [vmem:[%s1] sm:$0xf]
          %v182 = vld [vmem:[%s1 + $0x4] sm:$0x3]
          %v183 = vld [vmem:[%s178 + $0x8] sm:$0x1]
          %s184 = scalar_lea.vmem %s1, 8
          %v185 = vld [vmem:[%s184] sm:$0xf]
          %v186 = vld [vmem:[%s184 + $0x4] sm:$0x3]
          %v190 = vunpack.c.l.b16 %v179
          %v191 = vunpack.c.l.b16 %v180
          %v192 = vunpack.c.l.b16 %v183
          %v193 = vpack.c.b16 %v191, %v190
          %v194 = vpack.c.b16 %v192, %v192
          %vm195 = vsmask.f32 7424
          %v197 = vshrl.u32 %v193, 16
          %v199 = vshll.u32 %v193, 16
          %v201 = vrot.slane %v199, 1
          %v202 = vor.u32 %v197, %v201
          %v204 = vshll.u32 %v194, 16
          %v206 = vrot.slane %v204, 1
          %v207 = vsel %vm195, %v202, %v206
          %v210 = vunpack.c.l.b16 %v185
          %v211 = vunpack.c.l.b16 %v186
          %v212 = vpack.c.b16 %v211, %v210
          %vm213 = vcmask 97280
          %v215 = vsel %vm213, %v207, 0
          %vm217 = vcmask 1045504
          %v219 = vsel %vm217, %v212, 0
          %221 = vmatprep.subr.bf16.mxu0 0
          %222 = vmatpush1.bf16.msra.mxu0 %v219
          %223 = vmatprep.subr.bf16.mxu0 0
          %224 = vmatpush1.bf16.msra.mxu0 0
          %225 = vmatprep.subr.bf16.mxu0 0
          %226 = vmatpush1.bf16.msra.mxu0 0
          %227 = vmatprep.subr.bf16.mxu0 0
          %228 = vmatpush1.bf16.msra.mxu0 0
          %229 = vmatprep.subr.bf16.mxu0 0
          %230 = vmatpush1.bf16.msra.mxu0 0
          %231 = vmatprep.subr.bf16.mxu0 0
          %232 = vmatpush1.bf16.msra.mxu0 0
          %233 = vmatprep.subr.bf16.mxu0 0
          %234 = vmatpush1.bf16.msra.mxu0 0
          %235 = vmatprep.subr.bf16.mxu0 0
          %236 = vmatpush1.bf16.msra.mxu0 0
          %237 = vmatprep.subr.bf16.mxu0 0
          %238 = vmatpush1.bf16.msra.mxu0 0
          %239 = vmatprep.subr.bf16.mxu0 0
          %240 = vmatpush1.bf16.msra.mxu0 0
          %241 = vmatprep.subr.bf16.mxu0 0
          %242 = vmatpush1.bf16.msra.mxu0 0
          %243 = vmatprep.subr.bf16.mxu0 0
          %244 = vmatpush1.bf16.msra.mxu0 0
          %245 = vmatprep.subr.bf16.mxu0 0
          %246 = vmatpush1.bf16.msra.mxu0 0
          %247 = vmatprep.subr.bf16.mxu0 0
          %248 = vmatpush1.bf16.msra.mxu0 0
          %249 = vmatprep.subr.bf16.mxu0 0
          %250 = vmatpush1.bf16.msra.mxu0 0
          %251 = vmatprep.subr.bf16.mxu0 0
          %252 = vmatpush1.bf16.msra.mxu0 0
          %253 = vmatprep.mubr.bf16.mxu0 0
          %254 = vmatmul.mubr.bf16.gmra.mrb[0].mxu0 %v215
          %v255 = vpop.f32.mrb[0].mxu0
          %v256 = vadd.f32 0.0, %v255
          %v257 = vpop.f32.mrb[0].mxu0
          %v258 = vpop.f32.mrb[0].mxu0
          %v259 = vadd.f32 0.0, %v258
          %v260 = vpop.f32.mrb[0].mxu0
          %261 = vdwg.mxu0
          %v264 = vunpack.c.l.b16 %v181
          %v265 = vunpack.c.l.b16 %v182
          %v266 = vpack.c.b16 %v265, %v264
          %v267 = vsel %vm213, %v193, 0
          %v270 = vsel %vm217, %v266, 0
          %272 = vmatprep.subr.bf16.mxu0 0
          %273 = vmatpush1.bf16.msra.mxu0 %v270
          %274 = vmatprep.subr.bf16.mxu0 0
          %275 = vmatpush1.bf16.msra.mxu0 0
          %276 = vmatprep.subr.bf16.mxu0 0
          %277 = vmatpush1.bf16.msra.mxu0 0
          %278 = vmatprep.subr.bf16.mxu0 0
          %279 = vmatpush1.bf16.msra.mxu0 0
          %280 = vmatprep.subr.bf16.mxu0 0
          %281 = vmatpush1.bf16.msra.mxu0 0
          %282 = vmatprep.subr.bf16.mxu0 0
          %283 = vmatpush1.bf16.msra.mxu0 0
          %284 = vmatprep.subr.bf16.mxu0 0
          %285 = vmatpush1.bf16.msra.mxu0 0
          %286 = vmatprep.subr.bf16.mxu0 0
          %287 = vmatpush1.bf16.msra.mxu0 0
          %288 = vmatprep.subr.bf16.mxu0 0
          %289 = vmatpush1.bf16.msra.mxu0 0
          %290 = vmatprep.subr.bf16.mxu0 0
          %291 = vmatpush1.bf16.msra.mxu0 0
          %292 = vmatprep.subr.bf16.mxu0 0
          %293 = vmatpush1.bf16.msra.mxu0 0
          %294 = vmatprep.subr.bf16.mxu0 0
          %295 = vmatpush1.bf16.msra.mxu0 0
          %296 = vmatprep.subr.bf16.mxu0 0
          %297 = vmatpush1.bf16.msra.mxu0 0
          %298 = vmatprep.subr.bf16.mxu0 0
          %299 = vmatpush1.bf16.msra.mxu0 0
          %300 = vmatprep.subr.bf16.mxu0 0
          %301 = vmatpush1.bf16.msra.mxu0 0
          %302 = vmatprep.subr.bf16.mxu0 0
          %303 = vmatpush1.bf16.msra.mxu0 0
          %304 = vmatprep.mubr.bf16.mxu0 0
          %305 = vmatmul.mubr.bf16.gmra.mrb[0].mxu0 %v267
          %v306 = vpop.f32.mrb[0].mxu0
          %v307 = vadd.f32 %v256, %v306
          %v308 = vpop.f32.mrb[0].mxu0
          %v309 = vpop.f32.mrb[0].mxu0
          %v310 = vadd.f32 %v259, %v309
          %v311 = vpop.f32.mrb[0].mxu0
          %312 = vdwg.mxu0
          %s313 = sadd.s32 %s171, 1
          %s314 = smul.u32 %s313, 3
          %s315 = smul.addr %s314, 4
          %s316 = scalar_lea.vmem %s168, %s315
          %v317 = vld [vmem:[%s316] sm:$0xf]
          %v318 = vld [vmem:[%s316 + $0x4] sm:$0xf]
          %s319 = scalar_lea.vmem %s1, 16
          %v320 = vld [vmem:[%s319] sm:$0xf]
          %v321 = vld [vmem:[%s319 + $0x4] sm:$0x3]
          %v324 = vunpack.c.l.b16 %v317
          %v325 = vunpack.c.l.b16 %v318
          %v326 = vpack.c.b16 %v325, %v324
          %v329 = vunpack.c.l.b16 %v320
          %v330 = vunpack.c.l.b16 %v321
          %v331 = vpack.c.b16 %v330, %v329
          %v333 = vsel %vm213, %v326, 0
          %v336 = vsel %vm217, %v331, 0
          %338 = vmatprep.subr.bf16.mxu0 0
          %339 = vmatpush1.bf16.msra.mxu0 %v336
          %340 = vmatprep.subr.bf16.mxu0 0
          %341 = vmatpush1.bf16.msra.mxu0 0
          %342 = vmatprep.subr.bf16.mxu0 0
          %343 = vmatpush1.bf16.msra.mxu0 0
          %344 = vmatprep.subr.bf16.mxu0 0
          %345 = vmatpush1.bf16.msra.mxu0 0
          %346 = vmatprep.subr.bf16.mxu0 0
          %347 = vmatpush1.bf16.msra.mxu0 0
          %348 = vmatprep.subr.bf16.mxu0 0
          %349 = vmatpush1.bf16.msra.mxu0 0
          %350 = vmatprep.subr.bf16.mxu0 0
          %351 = vmatpush1.bf16.msra.mxu0 0
          %352 = vmatprep.subr.bf16.mxu0 0
          %353 = vmatpush1.bf16.msra.mxu0 0
          %354 = vmatprep.subr.bf16.mxu0 0
          %355 = vmatpush1.bf16.msra.mxu0 0
          %356 = vmatprep.subr.bf16.mxu0 0
          %357 = vmatpush1.bf16.msra.mxu0 0
          %358 = vmatprep.subr.bf16.mxu0 0
          %359 = vmatpush1.bf16.msra.mxu0 0
          %360 = vmatprep.subr.bf16.mxu0 0
          %361 = vmatpush1.bf16.msra.mxu0 0
          %362 = vmatprep.subr.bf16.mxu0 0
          %363 = vmatpush1.bf16.msra.mxu0 0
          %364 = vmatprep.subr.bf16.mxu0 0
          %365 = vmatpush1.bf16.msra.mxu0 0
          %366 = vmatprep.subr.bf16.mxu0 0
          %367 = vmatpush1.bf16.msra.mxu0 0
          %368 = vmatprep.subr.bf16.mxu0 0
          %369 = vmatpush1.bf16.msra.mxu0 0
          %370 = vmatprep.mubr.bf16.mxu0 0
          %371 = vmatmul.mubr.bf16.gmra.mrb[0].mxu0 %v333
          %v372 = vpop.f32.mrb[0].mxu0
          %v373 = vadd.f32 0.0, %v372
          %v374 = vpop.f32.mrb[0].mxu0
          %v375 = vpop.f32.mrb[0].mxu0
          %v376 = vadd.f32 0.0, %v375
          %v377 = vpop.f32.mrb[0].mxu0
          %378 = vdwg.mxu0
          %v379 = vadd.f32 %v307, %v373
          %v380 = vadd.f32 %v310, %v376
          %v381 = vld [vmem:[%s316] sm:$0xf]
          %v382 = vld [vmem:[%s316 + $0x4] sm:$0xf]
          %v383 = vld [vmem:[%s316 + $0x8] sm:$0x1]
          %s384 = scalar_lea.vmem %s1, 24
          %v385 = vld [vmem:[%s384] sm:$0xf]
          %v386 = vld [vmem:[%s384 + $0x4] sm:$0x3]
          %v390 = vunpack.c.l.b16 %v381
          %v391 = vunpack.c.l.b16 %v382
          %v392 = vunpack.c.l.b16 %v383
          %v393 = vpack.c.b16 %v391, %v390
          %v394 = vpack.c.b16 %v392, %v392
          %v396 = vshrl.u32 %v393, 16
          %v398 = vshll.u32 %v393, 16
          %v400 = vrot.slane %v398, 1
          %v401 = vor.u32 %v396, %v400
          %v403 = vshll.u32 %v394, 16
          %v405 = vrot.slane %v403, 1
          %v406 = vsel %vm195, %v401, %v405
          %v409 = vunpack.c.l.b16 %v385
          %v410 = vunpack.c.l.b16 %v386
          %v411 = vpack.c.b16 %v410, %v409
          %v413 = vsel %vm213, %v406, 0
          %v416 = vsel %vm217, %v411, 0
          %418 = vmatprep.subr.bf16.mxu0 0
          %419 = vmatpush1.bf16.msra.mxu0 %v416
          %420 = vmatprep.subr.bf16.mxu0 0
          %421 = vmatpush1.bf16.msra.mxu0 0
          %422 = vmatprep.subr.bf16.mxu0 0
          %423 = vmatpush1.bf16.msra.mxu0 0
          %424 = vmatprep.subr.bf16.mxu0 0
          %425 = vmatpush1.bf16.msra.mxu0 0
          %426 = vmatprep.subr.bf16.mxu0 0
          %427 = vmatpush1.bf16.msra.mxu0 0
          %428 = vmatprep.subr.bf16.mxu0 0
          %429 = vmatpush1.bf16.msra.mxu0 0
          %430 = vmatprep.subr.bf16.mxu0 0
          %431 = vmatpush1.bf16.msra.mxu0 0
          %432 = vmatprep.subr.bf16.mxu0 0
          %433 = vmatpush1.bf16.msra.mxu0 0
          %434 = vmatprep.subr.bf16.mxu0 0
          %435 = vmatpush1.bf16.msra.mxu0 0
          %436 = vmatprep.subr.bf16.mxu0 0
          %437 = vmatpush1.bf16.msra.mxu0 0
          %438 = vmatprep.subr.bf16.mxu0 0
          %439 = vmatpush1.bf16.msra.mxu0 0
          %440 = vmatprep.subr.bf16.mxu0 0
          %441 = vmatpush1.bf16.msra.mxu0 0
          %442 = vmatprep.subr.bf16.mxu0 0
          %443 = vmatpush1.bf16.msra.mxu0 0
          %444 = vmatprep.subr.bf16.mxu0 0
          %445 = vmatpush1.bf16.msra.mxu0 0
          %446 = vmatprep.subr.bf16.mxu0 0
          %447 = vmatpush1.bf16.msra.mxu0 0
          %448 = vmatprep.subr.bf16.mxu0 0
          %449 = vmatpush1.bf16.msra.mxu0 0
          %450 = vmatprep.mubr.bf16.mxu0 0
          %451 = vmatmul.mubr.bf16.gmra.mrb[0].mxu0 %v413
          %v452 = vpop.f32.mrb[0].mxu0
          %v453 = vadd.f32 0.0, %v452
          %v454 = vpop.f32.mrb[0].mxu0
          %v455 = vpop.f32.mrb[0].mxu0
          %v456 = vadd.f32 0.0, %v455
          %v457 = vpop.f32.mrb[0].mxu0
          %458 = vdwg.mxu0
          %v459 = vadd.f32 %v379, %v453
          %v460 = vadd.f32 %v380, %v456
          %v461 = vld [vmem:[%s2] sm:$0x1]
          %v463 = vlaneseq
          %v464 = vshrl.u32 %v463, 7
          %v465 = vsub.s32 0, %v464
          %v466 = vrot.slane %v461, %v465
          %v468 = vadd.f32 %v459, %v466
          %v469 = vadd.f32 %v460, %v466
          %vm470 = vcmp.ge.f32.partialorder %v468, 0.0
          %vm471 = vcmp.ge.f32.partialorder %v469, 0.0
          %v472 = vmul.f32 %v468, 0.2
          %v473 = vmul.f32 %v469, 0.2
          %v474 = vsel %vm470, %v468, %v472
          %v475 = vsel %vm471, %v469, %v473
          %v476 = vpack.c.bf16 %v475, %v474
          %v478 = vunpack.c.l.b16 %v476
          %v479 = vunpack.c.h.b16 %v476
          %v480 = vpack.c.b16 %v478, %v478
          %v481 = vpack.c.b16 %v479, %v479
          %s484 = smul.u32 %s171, 2
          %s485 = smul.addr %s484, 4
          %s486 = scalar_lea.vmem %s163, %s485 [#allocation2]
          %487 = vst [vmem:[%s486] sm:$0xf] %v480
          %488 = vst [vmem:[%s486 + $0x4] sm:$0xf] %v481
        $region37: #{tpu_custom_call.1} parent=31 // loop_footer
          %s175 = sadd.s32 1, %s171
        $region38: #{tpu_custom_call.1} parent=31 // loop_footer_branch
          %170 = sbr.rel target = $region34
        $region39: #{tpu_custom_call.1} parent=31 // loop_exit
          _
        %s489 = sand.u32 %s93, 1
        %s490 = scalar_lea.sflag [#allocation3], %s489
        %s491 = sand.u32 %s93, 1
        %s492 = smul.addr %s491, 128
        %s493 = scalar_lea.vmem [#allocation2], %s492
        // Predicated region
        $region40: #{tpu_custom_call.1} parent=31 // pred_check
          %p494 = pneg %p103
        $region41: #{tpu_custom_call.1} parent=31 // pred_check_branch
          %496 = sbr.rel (%p494) target = $region43
        $region42: #{tpu_custom_call.1} parent=31 // pred_region
          %s498 = ssub.s32 2048, 2048
          %499 = vsyncadd %s490, %s498
          %s500 = smul.addr %s17, 32
          %s501 = smul.addr %s500, 64
          %s502 = scalar_lea.hbm %s3, %s501
          %s503 = sshll.u32 %s493, 4
          %s504 = int_to_ptr.vmem [resolvable:$true] %s503
          %509 = dma.vmem_to_hbm [thread:$0]  %s504, 2048, %s502, %s490, 64, 64, 4
        $region43: #{tpu_custom_call.1} parent=31 // pred_fallthru
          _
      $region32: #{tpu_custom_call.1} parent=5 // pred_fallthru
        _
      %p510 = scmp.le.s32.totalorder 2, %s12
      // Predicated region
      $region44: #{tpu_custom_call.1} parent=5 // pred_check
        %p511 = pneg %p510
      $region45: #{tpu_custom_call.1} parent=5 // pred_check_branch
        %513 = sbr.rel (%p511) target = $region47
      $region46: #{tpu_custom_call.1} parent=5 // pred_region
        %s514 = ssub.s32 %s12, 2
        // Predicated region
        $region48: #{tpu_custom_call.1} parent=46 // pred_check
          %p515 = pneg %p109
        $region49: #{tpu_custom_call.1} parent=46 // pred_check_branch
          %517 = sbr.rel (%p515) target = $region51
        $region50: #{tpu_custom_call.1} parent=46 // pred_region
          %s518 = sand.u32 %s94, 1
          %s519 = scalar_lea.sflag [#allocation3], %s518
          %s520 = sand.u32 %s94, 1
          %s521 = smul.addr %s520, 128
          %s522 = scalar_lea.vmem [#allocation2], %s521
          %523 = dma.done %s519, 2048
        $region51: #{tpu_custom_call.1} parent=46 // pred_fallthru
          _
      $region47: #{tpu_custom_call.1} parent=5 // pred_fallthru
        _
    $region6: #{tpu_custom_call.1} parent=1 // loop_footer
      %s16 = sadd.s32 1, %s12
    $region7: #{tpu_custom_call.1} parent=1 // loop_footer_branch
      %11 = sbr.rel target = $region3
    $region8: #{tpu_custom_call.1} parent=1 // loop_exit
      _
    %524 = vsyncpa [#allocation3], 1
    %s525 = scalar_lea.sflag [#allocation3], 1
    %526 = vsyncpa %s525, 1

</llo_original>
